<compile_context>
chip_gen: v7x
topology: tpu7x:2x2x1
jax: 0.10.0
libtpu: 0.0.40
codegen_flags: <defaults>
</compile_context>

<pallas_src>
import jax
import jax.numpy as jnp
from jax.experimental import pallas as pl
from jax.experimental.pallas import tpu as pltpu


def _round_up(x, m):
    return ((x + m - 1) // m) * m


def _row_ce_terms(shifted, labels, n_rows, n_cls):
    """Per-row (logsumexp - target_logit), given max-shifted f32 logits and (rows,1) labels."""
    lse = jnp.log(jnp.sum(jnp.exp(shifted), axis=-1, keepdims=True))          # (rows, 1)
    iota = jax.lax.broadcasted_iota(jnp.int32, (n_rows, n_cls), 1)
    tgt = jnp.sum(jnp.where(iota == labels, shifted, 0.0), axis=-1, keepdims=True)
    return lse - tgt                                                           # (rows, 1)


def combined_criterion(graph_logits, graph_labels, node_logits, node_labels,
                       node_associations=None, node_loss_weight=0.5):
    """Returns (combined_loss, graph_loss, node_loss), each a scalar f32."""
    assert 0.0 <= node_loss_weight <= 1.0
    node_loss_weight = float(node_loss_weight)
    graph_loss_weight = 1.0 - node_loss_weight

    b, c_graph = graph_logits.shape
    n_nodes, c_node = node_logits.shape

    graph_labels_col = graph_labels.astype(jnp.int32).reshape(b, 1)
    node_labels_col = node_labels.astype(jnp.int32).reshape(n_nodes, 1)

    # Row-tile size: big enough (>=512 rows when possible) to amortize per-grid-step
    # overhead, small enough that the double-buffered lane-padded logits tiles stay well
    # under every chip's scoped VMEM limit.
    c_node_lanes = _round_up(max(c_node, 128), 128)
    tile_budget_bytes = 8 * 1024 * 1024                      # logits double-buffer budget
    tm = tile_budget_bytes // (2 * c_node_lanes * 4)
    tm = max(8, min(1024, (tm // 8) * 8))
    if n_nodes <= tm:
        tm = _round_up(n_nodes, 8)
    n_pad = _round_up(n_nodes, tm)
    num_tiles = n_pad // tm

    if n_pad != n_nodes:
        node_logits = jnp.pad(node_logits, ((0, n_pad - n_nodes), (0, 0)))
        node_labels_col = jnp.pad(node_labels_col, ((0, n_pad - n_nodes), (0, 0)))

    inv_n = 1.0 / float(n_nodes)
    inv_b = 1.0 / float(b)

    def kernel(graph_logits_ref, graph_labels_ref, node_logits_ref, node_labels_ref,
               combined_ref, graph_loss_ref, node_loss_ref, acc_ref):
        pid = pl.program_id(0)

        @pl.when(pid == 0)
        def _init():
            acc_ref[0] = jnp.float32(0.0)

        # ---- node CE partial sum for this row tile (padded tail rows masked out).
        x = node_logits_ref[...].astype(jnp.float32)                           # (tm, c_node)
        m = jnp.max(x, axis=-1, keepdims=True)
        terms = _row_ce_terms(x - m, node_labels_ref[...], tm, c_node)         # (tm, 1)
        row_ids = pid * tm + jax.lax.broadcasted_iota(jnp.int32, (tm, 1), 0)
        terms = jnp.where(row_ids < n_nodes, terms, 0.0)
        acc_ref[0] += jnp.sum(terms)

        # ---- finalize: tiny graph CE + means + weighted combine (single step).
        @pl.when(pid == pl.num_programs(0) - 1)
        def _finalize():
            gx = graph_logits_ref[...].astype(jnp.float32)                     # (b, c_graph)
            gm = jnp.max(gx, axis=-1, keepdims=True)
            g_terms = _row_ce_terms(gx - gm, graph_labels_ref[...], b, c_graph)
            graph_loss = jnp.sum(g_terms) * inv_b
            node_loss = acc_ref[0] * inv_n
            combined_ref[0, 0] = graph_loss_weight * graph_loss + node_loss_weight * node_loss
            graph_loss_ref[0, 0] = graph_loss
            node_loss_ref[0, 0] = node_loss

    scalar_out = jax.ShapeDtypeStruct((1, 1), jnp.float32)
    smem_out = pl.BlockSpec((1, 1), lambda i: (0, 0),
                            memory_space=pltpu.MemorySpace.SMEM)

    combined, g_loss, n_loss = pl.pallas_call(
        kernel,
        out_shape=(scalar_out, scalar_out, scalar_out),
        grid=(num_tiles,),
        in_specs=[
            pl.BlockSpec((b, c_graph), lambda i: (0, 0)),   # tiny, resident, DMA'd once
            pl.BlockSpec((b, 1), lambda i: (0, 0)),
            pl.BlockSpec((tm, c_node), lambda i: (i, 0)),   # streamed + double-buffered
            pl.BlockSpec((tm, 1), lambda i: (i, 0)),
        ],
        out_specs=(smem_out, smem_out, smem_out),
        scratch_shapes=[pltpu.SMEM((1,), jnp.float32)],
        compiler_params=pltpu.CompilerParams(
            dimension_semantics=("arbitrary",),             # carried SMEM accumulator
            vmem_limit_bytes=32 * 1024 * 1024,
        ),
    )(graph_logits, graph_labels_col, node_logits, node_labels_col)

    return combined[0, 0], g_loss[0, 0], n_loss[0, 0]


def _reference(graph_logits, graph_labels, node_logits, node_labels, node_loss_weight=0.5):
    def ce(logits, labels):
        logits = logits.astype(jnp.float32)
        lse = jax.scipy.special.logsumexp(logits, axis=-1)
        tgt = jnp.take_along_axis(logits, labels[:, None].astype(jnp.int32), axis=-1)[:, 0]
        return jnp.mean(lse - tgt)
    gl = ce(graph_logits, graph_labels)
    nl = ce(node_logits, node_labels)
    return (1.0 - node_loss_weight) * gl + node_loss_weight * nl, gl, nl


if __name__ == "__main__":
    key = jax.random.PRNGKey(0)
    k1, k2, k3, k4 = jax.random.split(key, 4)

    B, C_GRAPH = 2, 4          # graphs, graph classes
    N_NODES, C_NODE = 16, 8    # total nodes across the batch, node classes

    graph_logits = jax.random.normal(k1, (B, C_GRAPH), dtype=jnp.float32)
    graph_labels = jax.random.randint(k2, (B,), 0, C_GRAPH, dtype=jnp.int32)
    node_logits = jax.random.normal(k3, (N_NODES, C_NODE), dtype=jnp.float32)
    node_labels = jax.random.randint(k4, (N_NODES,), 0, C_NODE, dtype=jnp.int32)
    node_associations = [10, 6]  # nodes-per-graph (API parity only)

    combined, g_loss, n_loss = combined_criterion(
        graph_logits, graph_labels, node_logits, node_labels,
        node_associations=node_associations, node_loss_weight=0.5)
    jax.block_until_ready((combined, g_loss, n_loss))

    ref_c, ref_g, ref_n = _reference(graph_logits, graph_labels, node_logits, node_labels)
    assert jnp.allclose(combined, ref_c, atol=1e-5), (combined, ref_c)
    assert jnp.allclose(g_loss, ref_g, atol=1e-5), (g_loss, ref_g)
    assert jnp.allclose(n_loss, ref_n, atol=1e-5), (n_loss, ref_n)

    print("KERNEL_OK")
</pallas_src>

<mosaic_0001>
module attributes {stable_mosaic.version = 11 : i64} {
  func.func @kernel(%arg0: i32, %arg1: memref<2x4xf32, #tpu.memory_space<vmem>>, %arg2: memref<2x1xi32, #tpu.memory_space<vmem>>, %arg3: memref<16x8xf32, #tpu.memory_space<vmem>>, %arg4: memref<16x1xi32, #tpu.memory_space<vmem>>, %arg5: memref<1x1xf32, #tpu.memory_space<smem>>, %arg6: memref<1x1xf32, #tpu.memory_space<smem>>, %arg7: memref<1x1xf32, #tpu.memory_space<smem>>, %arg8: memref<1xf32, #tpu.memory_space<smem>>) attributes {dimension_semantics = [#tpu.dimension_semantics<arbitrary>], iteration_bounds = array<i64: 1>, scalar_prefetch = 0 : i64, scratch_operands = 1 : i64, tpu.core_type = #tpu.core_type<tc>, window_params = [{pipeline_mode = #tpu.pipeline_mode<synchronous>, transform_indices = @transform_0, window_bounds = array<i64: 2, 4>}, {pipeline_mode = #tpu.pipeline_mode<synchronous>, transform_indices = @transform_1, window_bounds = array<i64: 2, 1>}, {transform_indices = @transform_2, window_bounds = array<i64: 16, 8>}, {transform_indices = @transform_3, window_bounds = array<i64: 16, 1>}, {transform_indices = @transform_4, window_bounds = array<i64: 1, 1>}, {transform_indices = @transform_5, window_bounds = array<i64: 1, 1>}, {transform_indices = @transform_6, window_bounds = array<i64: 1, 1>}]} {
    %c0_i32 = arith.constant 0 : i32
    %0 = arith.cmpi eq, %arg0, %c0_i32 : i32
    %1 = arith.extui %0 : i1 to i32
    %c0_i32_0 = arith.constant 0 : i32
    %2 = arith.cmpi ne, %1, %c0_i32_0 : i32
    scf.if %2 {
      %cst_14 = arith.constant 0.000000e+00 : f32
      %c0_15 = arith.constant 0 : index
      %39 = memref.load %arg8[%c0_15] : memref<1xf32, #tpu.memory_space<smem>>
      memref.store %cst_14, %arg8[%c0_15] : memref<1xf32, #tpu.memory_space<smem>>
    } else {
    }
    %c0 = arith.constant 0 : index
    %c0_1 = arith.constant 0 : index
    %3 = vector.load %arg3[%c0, %c0_1] : memref<16x8xf32, #tpu.memory_space<vmem>>, vector<16x8xf32>
    %cst = arith.constant dense<0xFF800000> : vector<16xf32>
    %4 = vector.multi_reduction <maximumf>, %3, %cst [1] : vector<16x8xf32> to vector<16xf32>
    %5 = vector.shape_cast %4 : vector<16xf32> to vector<16x1xf32>
    %6 = vector.broadcast %5 : vector<16x1xf32> to vector<16x8xf32>
    %7 = arith.subf %3, %6 : vector<16x8xf32>
    %c0_2 = arith.constant 0 : index
    %c0_3 = arith.constant 0 : index
    %8 = vector.load %arg4[%c0_2, %c0_3] : memref<16x1xi32, #tpu.memory_space<vmem>>, vector<16x1xi32>
    %9 = math.exp %7 : vector<16x8xf32>
    %cst_4 = arith.constant dense<0.000000e+00> : vector<16xf32>
    %10 = vector.multi_reduction <add>, %9, %cst_4 [1] : vector<16x8xf32> to vector<16xf32>
    %11 = vector.shape_cast %10 : vector<16xf32> to vector<16x1xf32>
    %12 = math.log %11 : vector<16x1xf32>
    %13 = tpu.iota {dimensions = array<i32: 1>} : vector<16x8xi32>
    %14 = vector.broadcast %8 : vector<16x1xi32> to vector<16x8xi32>
    %15 = arith.cmpi eq, %13, %14 : vector<16x8xi32>
    %cst_5 = arith.constant 0.000000e+00 : f32
    %16 = vector.broadcast %cst_5 : f32 to vector<16x8xf32>
    %17 = arith.select %15, %7, %16 : vector<16x8xi1>, vector<16x8xf32>
    %cst_6 = arith.constant dense<0.000000e+00> : vector<16xf32>
    %18 = vector.multi_reduction <add>, %17, %cst_6 [1] : vector<16x8xf32> to vector<16xf32>
    %19 = vector.shape_cast %18 : vector<16xf32> to vector<16x1xf32>
    %20 = arith.subf %12, %19 : vector<16x1xf32>
    %c16_i32 = arith.constant 16 : i32
    %21 = arith.muli %arg0, %c16_i32 : i32
    %22 = tpu.iota {dimensions = array<i32: 0>} : vector<16x1xi32>
    %23 = vector.broadcast %21 : i32 to vector<16x1xi32>
    %24 = arith.addi %23, %22 : vector<16x1xi32>
    %c16_i32_7 = arith.constant 16 : i32
    %25 = vector.broadcast %c16_i32_7 : i32 to vector<16x1xi32>
    %26 = arith.cmpi slt, %24, %25 : vector<16x1xi32>
    %cst_8 = arith.constant 0.000000e+00 : f32
    %27 = vector.broadcast %cst_8 : f32 to vector<16x1xf32>
    %28 = arith.select %26, %20, %27 : vector<16x1xi1>, vector<16x1xf32>
    %c0_9 = arith.constant 0 : index
    %29 = memref.load %arg8[%c0_9] : memref<1xf32, #tpu.memory_space<smem>>
    %30 = vector.shape_cast %28 : vector<16x1xf32> to vector<1x16x1xf32>
    %cst_10 = arith.constant dense<0.000000e+00> : vector<1xf32>
    %31 = vector.multi_reduction <add>, %30, %cst_10 [1, 2] : vector<1x16x1xf32> to vector<1xf32>
    %32 = vector.shape_cast %31 : vector<1xf32> to vector<1x1x1xf32>
    %33 = vector.extract %32[0, 0, 0] : f32 from vector<1x1x1xf32>
    %34 = arith.addf %29, %33 : f32
    %c0_11 = arith.constant 0 : index
    %35 = memref.load %arg8[%c0_11] : memref<1xf32, #tpu.memory_space<smem>>
    memref.store %34, %arg8[%c0_11] : memref<1xf32, #tpu.memory_space<smem>>
    %c0_i32_12 = arith.constant 0 : i32
    %36 = arith.cmpi eq, %arg0, %c0_i32_12 : i32
    %37 = arith.extui %36 : i1 to i32
    %c0_i32_13 = arith.constant 0 : i32
    %38 = arith.cmpi ne, %37, %c0_i32_13 : i32
    scf.if %38 {
      %c0_14 = arith.constant 0 : index
      %c0_15 = arith.constant 0 : index
      %39 = vector.load %arg1[%c0_14, %c0_15] : memref<2x4xf32, #tpu.memory_space<vmem>>, vector<2x4xf32>
      %cst_16 = arith.constant dense<0xFF800000> : vector<2xf32>
      %40 = vector.multi_reduction <maximumf>, %39, %cst_16 [1] : vector<2x4xf32> to vector<2xf32>
      %41 = vector.shape_cast %40 : vector<2xf32> to vector<2x1xf32>
      %42 = vector.broadcast %41 : vector<2x1xf32> to vector<2x4xf32>
      %43 = arith.subf %39, %42 : vector<2x4xf32>
      %c0_17 = arith.constant 0 : index
      %c0_18 = arith.constant 0 : index
      %44 = vector.load %arg2[%c0_17, %c0_18] : memref<2x1xi32, #tpu.memory_space<vmem>>, vector<2x1xi32>
      %45 = math.exp %43 : vector<2x4xf32>
      %cst_19 = arith.constant dense<0.000000e+00> : vector<2xf32>
      %46 = vector.multi_reduction <add>, %45, %cst_19 [1] : vector<2x4xf32> to vector<2xf32>
      %47 = vector.shape_cast %46 : vector<2xf32> to vector<2x1xf32>
      %48 = math.log %47 : vector<2x1xf32>
      %49 = tpu.iota {dimensions = array<i32: 1>} : vector<2x4xi32>
      %50 = vector.broadcast %44 : vector<2x1xi32> to vector<2x4xi32>
      %51 = arith.cmpi eq, %49, %50 : vector<2x4xi32>
      %cst_20 = arith.constant 0.000000e+00 : f32
      %52 = vector.broadcast %cst_20 : f32 to vector<2x4xf32>
      %53 = arith.select %51, %43, %52 : vector<2x4xi1>, vector<2x4xf32>
      %cst_21 = arith.constant dense<0.000000e+00> : vector<2xf32>
      %54 = vector.multi_reduction <add>, %53, %cst_21 [1] : vector<2x4xf32> to vector<2xf32>
      %55 = vector.shape_cast %54 : vector<2xf32> to vector<2x1xf32>
      %56 = arith.subf %48, %55 : vector<2x1xf32>
      %57 = vector.shape_cast %56 : vector<2x1xf32> to vector<1x2x1xf32>
      %cst_22 = arith.constant dense<0.000000e+00> : vector<1xf32>
      %58 = vector.multi_reduction <add>, %57, %cst_22 [1, 2] : vector<1x2x1xf32> to vector<1xf32>
      %59 = vector.shape_cast %58 : vector<1xf32> to vector<1x1x1xf32>
      %60 = vector.extract %59[0, 0, 0] : f32 from vector<1x1x1xf32>
      %cst_23 = arith.constant 5.000000e-01 : f32
      %61 = arith.mulf %60, %cst_23 : f32
      %c0_24 = arith.constant 0 : index
      %62 = memref.load %arg8[%c0_24] : memref<1xf32, #tpu.memory_space<smem>>
      %cst_25 = arith.constant 6.250000e-02 : f32
      %63 = arith.mulf %62, %cst_25 : f32
      %cst_26 = arith.constant 5.000000e-01 : f32
      %64 = arith.mulf %cst_26, %61 : f32
      %cst_27 = arith.constant 5.000000e-01 : f32
      %65 = arith.mulf %cst_27, %63 : f32
      %66 = arith.addf %64, %65 : f32
      %c0_28 = arith.constant 0 : index
      %c0_29 = arith.constant 0 : index
      %67 = memref.load %arg5[%c0_28, %c0_29] : memref<1x1xf32, #tpu.memory_space<smem>>
      memref.store %66, %arg5[%c0_28, %c0_29] : memref<1x1xf32, #tpu.memory_space<smem>>
      %c0_30 = arith.constant 0 : index
      %c0_31 = arith.constant 0 : index
      %68 = memref.load %arg6[%c0_30, %c0_31] : memref<1x1xf32, #tpu.memory_space<smem>>
      memref.store %61, %arg6[%c0_30, %c0_31] : memref<1x1xf32, #tpu.memory_space<smem>>
      %c0_32 = arith.constant 0 : index
      %c0_33 = arith.constant 0 : index
      %69 = memref.load %arg7[%c0_32, %c0_33] : memref<1x1xf32, #tpu.memory_space<smem>>
      memref.store %63, %arg7[%c0_32, %c0_33] : memref<1x1xf32, #tpu.memory_space<smem>>
    } else {
    }
    return
  }
  func.func @transform_0(%arg0: i32) -> (i32, i32) {
    %c0_i32 = arith.constant 0 : i32
    %c0_i32_0 = arith.constant 0 : i32
    %c0_i32_1 = arith.constant 0 : i32
    return %c0_i32, %c0_i32_0 : i32, i32
  }
  func.func @transform_1(%arg0: i32) -> (i32, i32) {
    %c0_i32 = arith.constant 0 : i32
    %c0_i32_0 = arith.constant 0 : i32
    %c0_i32_1 = arith.constant 0 : i32
    return %c0_i32, %c0_i32_0 : i32, i32
  }
  func.func @transform_2(%arg0: i32) -> (i32, i32) {
    %c0_i32 = arith.constant 0 : i32
    %c0_i32_0 = arith.constant 0 : i32
    return %arg0, %c0_i32 : i32, i32
  }
  func.func @transform_3(%arg0: i32) -> (i32, i32) {
    %c0_i32 = arith.constant 0 : i32
    %c0_i32_0 = arith.constant 0 : i32
    return %arg0, %c0_i32 : i32, i32
  }
  func.func @transform_4(%arg0: i32) -> (i32, i32) {
    %c0_i32 = arith.constant 0 : i32
    %c0_i32_0 = arith.constant 0 : i32
    %c0_i32_1 = arith.constant 0 : i32
    return %c0_i32, %c0_i32_0 : i32, i32
  }
  func.func @transform_5(%arg0: i32) -> (i32, i32) {
    %c0_i32 = arith.constant 0 : i32
    %c0_i32_0 = arith.constant 0 : i32
    %c0_i32_1 = arith.constant 0 : i32
    return %c0_i32, %c0_i32_0 : i32, i32
  }
  func.func @transform_6(%arg0: i32) -> (i32, i32) {
    %c0_i32 = arith.constant 0 : i32
    %c0_i32_0 = arith.constant 0 : i32
    %c0_i32_1 = arith.constant 0 : i32
    return %c0_i32, %c0_i32_0 : i32, i32
  }
}

</mosaic_0001>

<llo_original>
// kernel: tpu_custom_call.1
$region0: #{tpu_custom_call.1}
  #allocation0 [shape = 'u32[]', space=smem, size = 0x4, offset = 0x4, fixed_abs, tag = 'smem constant byte address 0x4 - core index']
  #allocation1 [shape = 'u32[144,128]{1,0:T(1,128)}', space=vmem, size = 0x12000, scoped, tag = 'internal scratch']
  #allocation2 [shape = 'f32[1]{0:T(128)}', space=smem, size = 0x200, scoped, tag = 'scratch operand']
  %s0 = inlined_call_operand.vmem [shape: f32[2,4], index: 0, kind: input, shape index: {}]
  %s1 = inlined_call_operand.vmem [shape: s32[2,1], index: 1, kind: input, shape index: {}]
  %s2 = inlined_call_operand.vmem [shape: f32[16,8], index: 2, kind: input, shape index: {}]
  %s3 = inlined_call_operand.vmem [shape: s32[16,1], index: 3, kind: input, shape index: {}]
  %s4 = inlined_call_operand.hbm [shape: f32[1,1], index: 4, kind: output, shape index: {0}]
  %s5 = inlined_call_operand.hbm [shape: f32[1,1], index: 5, kind: output, shape index: {1}]
  %s6 = inlined_call_operand.hbm [shape: f32[1,1], index: 6, kind: output, shape index: {2}]
  %7 = xla_tuple %s4, %s5, %s6
  %s8 = sld [smem:[#allocation0]]
  $region50: #{tpu_custom_call.1} parent=0
    _
  %s10 = ssub.s32 1, %s8
  %s11 = scalar_select 0, %s10, %s8
  $region1: #{tpu_custom_call.1} parent=0
    #allocation3 [shape = 'u8[512]{0}', space=smem, size = 0x200, scoped, tag = 'output window, operand 0, single buffered']
    #allocation4 [shape = 's32[1]{0}', space=sflag, size = 0x4, scoped, tag = 'scoped memory for tpu_custom_call.1']
    #allocation5 [shape = 'u8[512]{0}', space=smem, size = 0x200, scoped, tag = 'output window, operand 1, single buffered']
    #allocation6 [shape = 's32[1]{0}', space=sflag, size = 0x4, scoped, tag = 'scoped memory for tpu_custom_call.1']
    #allocation7 [shape = 'u8[512]{0}', space=smem, size = 0x200, scoped, tag = 'output window, operand 2, single buffered']
    %12 = vsyncpa [#allocation4], 0
    %13 = vsyncpa [#allocation6], 0
    // Predicated region
    $region2: #{tpu_custom_call.1} parent=1 // pred_check
      _
    $region3: #{tpu_custom_call.1} parent=1 // pred_check_branch
      %15 = sbr.rel (0) target = $region5
    $region4: #{tpu_custom_call.1} parent=1 // pred_region
      _
    $region5: #{tpu_custom_call.1} parent=1 // pred_fallthru
      _
    // Predicated region
    $region6: #{tpu_custom_call.1} parent=1 // pred_check
      _
    $region7: #{tpu_custom_call.1} parent=1 // pred_check_branch
      %17 = sbr.rel (0) target = $region9
    $region8: #{tpu_custom_call.1} parent=1 // pred_region
      _
    $region9: #{tpu_custom_call.1} parent=1 // pred_fallthru
      _
    // Predicated region
    $region10: #{tpu_custom_call.1} parent=1 // pred_check
      _
    $region11: #{tpu_custom_call.1} parent=1 // pred_check_branch
      %19 = sbr.rel (0) target = $region13
    $region12: #{tpu_custom_call.1} parent=1 // pred_region
      _
    $region13: #{tpu_custom_call.1} parent=1 // pred_fallthru
      _
    // Predicated region
    $region14: #{tpu_custom_call.1} parent=1 // pred_check
      _
    $region15: #{tpu_custom_call.1} parent=1 // pred_check_branch
      %21 = sbr.rel (0) target = $region17
    $region16: #{tpu_custom_call.1} parent=1 // pred_region
      _
    $region17: #{tpu_custom_call.1} parent=1 // pred_fallthru
      _
    %p22 = scmp.eq.s32.totalorder 0, 0
    // Predicated region
    $region18: #{tpu_custom_call.1} parent=1 // pred_check
      %p23 = pneg %p22
    $region19: #{tpu_custom_call.1} parent=1 // pred_check_branch
      %25 = sbr.rel (%p23) target = $region21
    $region20: #{tpu_custom_call.1} parent=1 // pred_region
      %s26 = scalar_lea.smem [#allocation2], 0
      %27 = sst [smem:[%s26]] 0.0
    $region21: #{tpu_custom_call.1} parent=1 // pred_fallthru
      _
    %v28 = vld [vmem:[%s2] sm:$0xff]
    %v29 = vld [vmem:[%s2 + $0x8] sm:$0xff]
    %vm30 = vcmask 64512
    %v31 = vsel %vm30, %v28, -inf
    %32 = vmax.xlane.f32.xlu0 %v31
    %v33 = vpop.xlane.xlu0 %32
    %v34 = vsel %vm30, %v29, -inf
    %35 = vmax.xlane.f32.xlu0 %v34
    %v36 = vpop.xlane.xlu0 %35
    %v37 = vsub.f32 %v28, %v33
    %v38 = vsub.f32 %v29, %v36
    %v39 = vld [vmem:[%s3] sm:$0xff]
    %v40 = vld [vmem:[%s3 + $0x8] sm:$0xff]
    %v41 = vmul.f32 %v37, 1.442695
    %v42 = vpow.pop %v41
    %v43 = vmul.f32 %v38, 1.442695
    %v44 = vpow.pop %v43
    %v45 = vsel %vm30, %v42, 0.0
    %46 = vadd.xlane.f32.xlu0 %v45
    %v47 = vpop.xlane.xlu0 %46
    %v48 = vsel %vm30, %v44, 0.0
    %49 = vadd.xlane.f32.xlu0 %v48
    %v50 = vpop.xlane.xlu0 %49
    %v51 = vlog2.pop %v47
    %v52 = vmul.f32 %v51, 0.6931472
    %v53 = vlog2.pop %v50
    %v54 = vmul.f32 %v53, 0.6931472
    %v55 = vlaneseq
    %v56 = vand.u32 %v55, 127
    %57 = vset.pattern.permute.xlu0 0
    %58 = vperm.xlu0 %57, %v39
    %v59 = vpop.permute.xlu0 %58
    %60 = vset.pattern.permute.xlu0 0
    %61 = vperm.xlu0 %60, %v40
    %v62 = vpop.permute.xlu0 %61
    %vm63 = vcmp.eq.s32.totalorder %v56, %v59
    %vm64 = vcmp.eq.s32.totalorder %v56, %v62
    %v65 = vsel %vm63, %v37, 0.0
    %v66 = vsel %vm64, %v38, 0.0
    %v67 = vsel %vm30, %v65, 0.0
    %68 = vadd.xlane.f32.xlu0 %v67
    %v69 = vpop.xlane.xlu0 %68
    %v70 = vsel %vm30, %v66, 0.0
    %71 = vadd.xlane.f32.xlu0 %v70
    %v72 = vpop.xlane.xlu0 %71
    %v73 = vsub.f32 %v52, %v69
    %v74 = vsub.f32 %v54, %v72
    %s75 = smul.u32 0, 16
    %v76 = vlaneseq
    %v77 = vshrl.u32 %v76, 7
    %v78 = vadd.s32 %v77, 8
    %v79 = vstv %s75
    %v80 = vadd.s32 %v79, %v77
    %v81 = vadd.s32 %v79, %v78
    %vm82 = vcmp.lt.s32.totalorder %v80, 16
    %vm83 = vcmp.lt.s32.totalorder %v81, 16
    %v84 = vsel %vm82, %v73, 0.0
    %v85 = vsel %vm83, %v74, 0.0
    %s86 = sld [smem:[#allocation2]]
    %vm87 = vcmask 7168
    %v88 = vsel %vm87, %v84, 0.0
    %v89 = vsel %vm87, %v85, 0.0
    %v90 = vadd.f32 %v88, %v89
    %91 = vadd.xlane.f32.xlu0 %v90
    %v92 = vpop.xlane.xlu0 %91
    %v93 = vrot.slane %v92, 4
    %v94 = vadd.f32 %v92, %v93
    %v95 = vrot.slane %v94, 2
    %v96 = vadd.f32 %v94, %v95
    %v97 = vrot.slane %v96, 1
    %v98 = vadd.f32 %v96, %v97
    %s99 = vtos %v98
    %s100 = sadd.f32 %s86, %s99
    %s101 = scalar_lea.smem [#allocation2], 0
    %102 = sst [smem:[%s101]] %s100
    // Predicated region
    $region22: #{tpu_custom_call.1} parent=1 // pred_check
      %p103 = pneg %p22
    $region23: #{tpu_custom_call.1} parent=1 // pred_check_branch
      %105 = sbr.rel (%p103) target = $region25
    $region24: #{tpu_custom_call.1} parent=1 // pred_region
      %v106 = vld [vmem:[%s0] sm:$0x3]
      %vm107 = vcmask 25600
      %v108 = vsel %vm107, %v106, -inf
      %109 = vmax.xlane.f32.xlu0 %v108
      %v110 = vpop.xlane.xlu0 %109
      %v111 = vsub.f32 %v106, %v110
      %v112 = vld [vmem:[%s1] sm:$0x3]
      %v113 = vmul.f32 %v111, 1.442695
      %v114 = vpow.pop %v113
      %v115 = vsel %vm107, %v114, 0.0
      %116 = vadd.xlane.f32.xlu0 %v115
      %v117 = vpop.xlane.xlu0 %116
      %v118 = vlog2.pop %v117
      %v119 = vmul.f32 %v118, 0.6931472
      %120 = vset.pattern.permute.xlu0 0
      %121 = vperm.xlu0 %120, %v112
      %v122 = vpop.permute.xlu0 %121
      %vm123 = vcmp.eq.s32.totalorder %v56, %v122
      %v124 = vsel %vm123, %v111, 0.0
      %v125 = vsel %vm107, %v124, 0.0
      %126 = vadd.xlane.f32.xlu0 %v125
      %v127 = vpop.xlane.xlu0 %126
      %v128 = vsub.f32 %v119, %v127
      %vm129 = vcmask 1024
      %v130 = vsel %vm129, %v128, 0.0
      %131 = vadd.xlane.f32.xlu0 %v130
      %v132 = vpop.xlane.xlu0 %131
      %v133 = vrot.slane %v132, 4
      %v134 = vadd.f32 %v132, %v133
      %v135 = vrot.slane %v134, 2
      %v136 = vadd.f32 %v134, %v135
      %v137 = vrot.slane %v136, 1
      %v138 = vadd.f32 %v136, %v137
      %s139 = vtos %v138
      %s140 = smul.f32 %s139, 0.5
      %s141 = sld [smem:[#allocation2]]
      %s142 = smul.f32 %s141, 0.0625
      %s143 = smul.f32 %s140, 0.5
      %s144 = smul.f32 %s142, 0.5
      %s145 = sadd.f32 %s143, %s144
      %s146 = scalar_lea.smem [#allocation3], 0
      %147 = sst [smem:[%s146]] %s145
      %s148 = scalar_lea.smem [#allocation5], 0
      %149 = sst [smem:[%s148]] %s140
      %s150 = scalar_lea.smem [#allocation7], 0
      %151 = sst [smem:[%s150]] %s142
    $region25: #{tpu_custom_call.1} parent=1 // pred_fallthru
      _
    // Predicated region
    $region26: #{tpu_custom_call.1} parent=1 // pred_check
      _
    $region27: #{tpu_custom_call.1} parent=1 // pred_check_branch
      %153 = sbr.rel (0) target = $region29
    $region28: #{tpu_custom_call.1} parent=1 // pred_region
      %s155 = ssub.s32 16, 16
      %156 = vsyncadd [#allocation4], %s155
      %159 = dma.smem_to_hbm [#allocation3], 16, %s4, [#allocation4]
    $region29: #{tpu_custom_call.1} parent=1 // pred_fallthru
      _
    // Predicated region
    $region30: #{tpu_custom_call.1} parent=1 // pred_check
      _
    $region31: #{tpu_custom_call.1} parent=1 // pred_check_branch
      %161 = sbr.rel (0) target = $region33
    $region32: #{tpu_custom_call.1} parent=1 // pred_region
      %s163 = ssub.s32 16, 16
      %164 = vsyncadd [#allocation6], %s163
      %167 = dma.smem_to_hbm [#allocation5], 16, %s5, [#allocation6]
    $region33: #{tpu_custom_call.1} parent=1 // pred_fallthru
      _
    // Predicated region
    $region34: #{tpu_custom_call.1} parent=1 // pred_check
      _
    $region35: #{tpu_custom_call.1} parent=1 // pred_check_branch
      %169 = sbr.rel (0) target = $region37
    $region36: #{tpu_custom_call.1} parent=1 // pred_region
      %s171 = ssub.s32 16, 16
      %172 = vsyncadd [#allocation6], %s171
      %175 = dma.smem_to_hbm [#allocation7], 16, %s6, [#allocation6]
    $region37: #{tpu_custom_call.1} parent=1 // pred_fallthru
      _
    // Predicated region
    $region38: #{tpu_custom_call.1} parent=1 // pred_check
      _
    $region39: #{tpu_custom_call.1} parent=1 // pred_check_branch
      %177 = sbr.rel (0) target = $region41
    $region40: #{tpu_custom_call.1} parent=1 // pred_region
      %178 = dma.done [#allocation4], 16
    $region41: #{tpu_custom_call.1} parent=1 // pred_fallthru
      _
    // Predicated region
    $region42: #{tpu_custom_call.1} parent=1 // pred_check
      _
    $region43: #{tpu_custom_call.1} parent=1 // pred_check_branch
      %180 = sbr.rel (0) target = $region45
    $region44: #{tpu_custom_call.1} parent=1 // pred_region
      %181 = dma.done [#allocation6], 16
    $region45: #{tpu_custom_call.1} parent=1 // pred_fallthru
      _
    // Predicated region
    $region46: #{tpu_custom_call.1} parent=1 // pred_check
      _
    $region47: #{tpu_custom_call.1} parent=1 // pred_check_branch
      %183 = sbr.rel (0) target = $region49
    $region48: #{tpu_custom_call.1} parent=1 // pred_region
      %184 = dma.done [#allocation6], 16
    $region49: #{tpu_custom_call.1} parent=1 // pred_fallthru
      _
    %185 = sfence
    %186 = vsyncpa [#allocation4], 1
    %187 = vsyncpa [#allocation6], 1

</llo_original>
